<compile_context>
chip_gen: v6e
topology: v6e:2x2x1
jax: 0.10.0
libtpu: 0.0.40
codegen_flags: <defaults>
</compile_context>

<pallas_src>
import numpy as np
import jax
import jax.numpy as jnp
from jax.experimental import pallas as pl
from jax.experimental.pallas import tpu as pltpu

# ---------------------------------------------------------------------------
# Deterministic "parameters" (ANI-2x-like constants, distances in nanometers)
# ---------------------------------------------------------------------------
NR_ELEMENTS = 7                      # nr_of_supported_elements
RADIAL_MAX = 0.51                    # radial_max_distance  [nm]
RADIAL_MIN = 0.08                    # radial_min_distance  [nm]
NUM_RADIAL = 16                      # number_of_radial_basis_functions
ETA_R = 1970.0                       # radial eta  [nm^-2]
RADIAL_PREFACTOR = 0.25

ANGULAR_MAX = 0.35                   # angular_max_distance [nm]
ANGULAR_MIN = 0.08                   # angular_min_distance [nm]
ANGULAR_DIST_DIVISIONS = 8           # -> 8 ShfA
ANGLE_SECTIONS = 4                   # -> 4 ShfZ
ETA_A = 1250.0                       # angular eta [nm^-2]
ZETA = 32                            # integer zeta -> exact repeated squaring

RADIAL_SUBLENGTH = NUM_RADIAL
ANGULAR_SUBLENGTH = ANGULAR_DIST_DIVISIONS * ANGLE_SECTIONS          # 32
NUM_SPECIES_PAIRS = NR_ELEMENTS * (NR_ELEMENTS + 1) // 2             # 28
RADIAL_LENGTH = NR_ELEMENTS * RADIAL_SUBLENGTH                       # 112
ANGULAR_LENGTH = NUM_SPECIES_PAIRS * ANGULAR_SUBLENGTH               # 896

K_TILE = 256                         # pairs/triples tile (contraction axis)
VMEM_LIMIT = 32 * 1024 * 1024        # explicit budget (fits v7x's 64 MiB VMEM)


def _round_up(x, m):
    return ((int(x) + m - 1) // m) * m


def _m_tiling(m_valid):
    """Pad the scatter-row count to a lane-dense bucket and pick the M tile."""
    m_pad = _round_up(max(int(m_valid), 1), 128)
    if m_pad <= 512:
        return m_pad, m_pad            # single M tile
    m_pad = _round_up(m_pad, 512)
    return m_pad, 512


# ---------------------------------------------------------------------------
# Pallas kernels
# ---------------------------------------------------------------------------
def _radial_kernel(d_ref, shifts_ref, idx0_ref, idx1_ref, out_ref):
    # d:[1,KT]  shifts:[16,1]  idx:[KT,1] int32  out:[16,MT] (lane-dense, f32)
    m = pl.program_id(0)
    k = pl.program_id(1)

    @pl.when(k == 0)
    def _init():
        out_ref[...] = jnp.zeros_like(out_ref)

    d = d_ref[...]                                            # [1, KT]
    shifts = shifts_ref[...]                                  # [16, 1]
    diff = d - shifts                                         # [16, KT]
    g = RADIAL_PREFACTOR * jnp.exp(-ETA_R * diff * diff)      # AniRadialSymmetryFunction
    fc = jnp.where(d < RADIAL_MAX,
                   0.5 * (jnp.cos(d * (np.pi / RADIAL_MAX)) + 1.0),
                   0.0)                                       # CosineCutoff
    feat = (g * fc).astype(jnp.bfloat16)                      # [16, KT]

    kt = d_ref.shape[1]
    mt = out_ref.shape[1]
    off = m * mt
    col = jax.lax.broadcasted_iota(jnp.int32, (kt, mt), 1)    # local column ids
    # index_add_ at index12[0] and index12[1] == sum of two one-hot matmuls
    onehot = ((col == (idx0_ref[...] - off)).astype(jnp.bfloat16)
              + (col == (idx1_ref[...] - off)).astype(jnp.bfloat16))   # [KT, MT]
    out_ref[...] += jnp.dot(feat, onehot, preferred_element_type=jnp.float32)


def _angular_kernel(ra_ref, rb_ref, idx_ref, shfa_ref, cos_shfz_ref,
                    sin_shfz_ref, out_ref):
    # ra,rb:[8,KT] (xyz in rows 0..2, rest zero)  shfa/cos/sin:[32,1]
    # idx:[KT,1] int32  out:[32,MT] (lane-dense, f32)
    m = pl.program_id(0)
    k = pl.program_id(1)

    @pl.when(k == 0)
    def _init():
        out_ref[...] = jnp.zeros_like(out_ref)

    ra = ra_ref[...]
    rb = rb_ref[...]
    da = jnp.sqrt(jnp.sum(ra * ra, axis=0, keepdims=True))    # [1, KT]
    db = jnp.sqrt(jnp.sum(rb * rb, axis=0, keepdims=True))    # [1, KT]
    dot_ab = jnp.sum(ra * rb, axis=0, keepdims=True)          # [1, KT]

    denom = jnp.maximum(da * db, 1e-8)
    inv = pl.reciprocal(denom, approx=True)                   # EUP slot
    inv = inv * (2.0 - denom * inv)                           # 1 Newton step -> ~f32
    cos_t = 0.95 * dot_ab * inv                               # 0.95*cosine_similarity
    sin_t = jnp.sqrt(jnp.maximum(1.0 - cos_t * cos_t, 0.0))   # theta in [0, pi]

    # cos(theta - ShfZ) = cos(theta)cos(ShfZ) + sin(theta)sin(ShfZ)  (no acos)
    cos_tz = cos_t * cos_shfz_ref[...] + sin_t * sin_shfz_ref[...]    # [32, KT]
    base = 0.5 * (1.0 + cos_tz)
    f1 = base
    for _ in range(5):                                        # base ** 32 exactly
        f1 = f1 * f1
    dm = 0.5 * (da + db) - shfa_ref[...]                      # [32, KT]
    f2 = jnp.exp(-ETA_A * dm * dm)
    fc_a = jnp.where(da < ANGULAR_MAX,
                     0.5 * (jnp.cos(da * (np.pi / ANGULAR_MAX)) + 1.0), 0.0)
    fc_b = jnp.where(db < ANGULAR_MAX,
                     0.5 * (jnp.cos(db * (np.pi / ANGULAR_MAX)) + 1.0), 0.0)
    feat = (2.0 * f1 * f2 * (fc_a * fc_b)).astype(jnp.bfloat16)        # [32, KT]

    kt = ra_ref.shape[1]
    mt = out_ref.shape[1]
    col = jax.lax.broadcasted_iota(jnp.int32, (kt, mt), 1)
    onehot = (col == (idx_ref[...] - m * mt)).astype(jnp.bfloat16)     # [KT, MT]
    out_ref[...] += jnp.dot(feat, onehot, preferred_element_type=jnp.float32)


# ---------------------------------------------------------------------------
# Pallas wrappers (padding to static buckets, lane-dense transposed layout)
# ---------------------------------------------------------------------------
def radial_aev_pallas(d, radial_shifts, idx0, idx1, num_rows):
    """d:[P], radial_shifts:[16], idx0/idx1:[P] -> [num_rows, 16]."""
    P = int(np.asarray(d).shape[0])
    k_pad = _round_up(max(P, 1), K_TILE)
    m_pad, m_tile = _m_tiling(num_rows)

    # padded pairs: d beyond cutoff -> feat == 0 exactly; idx = -1 -> no scatter
    d_row = np.full((1, k_pad), 2.0 * RADIAL_MAX, np.float32)
    d_row[0, :P] = np.asarray(d, np.float32)
    idx0_col = np.full((k_pad, 1), -1, np.int32)
    idx1_col = np.full((k_pad, 1), -1, np.int32)
    idx0_col[:P, 0] = np.asarray(idx0, np.int32)
    idx1_col[:P, 0] = np.asarray(idx1, np.int32)
    shifts_col = np.asarray(radial_shifts, np.float32).reshape(NUM_RADIAL, 1)

    grid = (m_pad // m_tile, k_pad // K_TILE)
    out = pl.pallas_call(
        _radial_kernel,
        out_shape=jax.ShapeDtypeStruct((NUM_RADIAL, m_pad), jnp.float32),
        grid=grid,
        in_specs=[
            pl.BlockSpec((1, K_TILE), lambda m, k: (0, k)),
            pl.BlockSpec((NUM_RADIAL, 1), lambda m, k: (0, 0)),   # VMEM-resident const
            pl.BlockSpec((K_TILE, 1), lambda m, k: (k, 0)),
            pl.BlockSpec((K_TILE, 1), lambda m, k: (k, 0)),
        ],
        out_specs=pl.BlockSpec((NUM_RADIAL, m_tile), lambda m, k: (0, m)),
        compiler_params=pltpu.CompilerParams(
            dimension_semantics=("parallel", "arbitrary"),
            vmem_limit_bytes=VMEM_LIMIT),
        cost_estimate=pl.CostEstimate(
            flops=int(2 * NUM_RADIAL * k_pad * m_pad + 10 * NUM_RADIAL * k_pad),
            transcendentals=int(2 * NUM_RADIAL * k_pad),
            bytes_accessed=int(4 * (3 * k_pad + NUM_RADIAL + NUM_RADIAL * m_pad))),
    )(d_row, shifts_col, idx0_col, idx1_col)

    return jnp.transpose(out[:, :num_rows])                    # [num_rows, 16]


def angular_aev_pallas(ra, rb, shfa_flat, shfz_flat, idx, num_rows):
    """ra/rb:[T,3], shfa/shfz:[32], idx:[T] -> [num_rows, 32]."""
    T = int(np.asarray(ra).shape[0])
    k_pad = _round_up(max(T, 1), K_TILE)
    m_pad, m_tile = _m_tiling(num_rows)

    # lane-dense xyz: [8, T_pad], rows 3..7 zero.  Padded columns get a unit-x
    # vector (length 1 nm >> angular cutoff) so feat == 0 exactly; idx = -1.
    ra_t = np.zeros((8, k_pad), np.float32)
    rb_t = np.zeros((8, k_pad), np.float32)
    ra_t[0, :] = 1.0
    rb_t[0, :] = 1.0
    if T > 0:
        ra_t[:3, :T] = np.asarray(ra, np.float32).T
        rb_t[:3, :T] = np.asarray(rb, np.float32).T
    idx_col = np.full((k_pad, 1), -1, np.int32)
    idx_col[:T, 0] = np.asarray(idx, np.int32)

    A = int(np.asarray(shfa_flat).shape[0])                    # 32
    shfa_col = np.asarray(shfa_flat, np.float32).reshape(A, 1)
    cos_col = np.cos(np.asarray(shfz_flat, np.float64)).astype(np.float32).reshape(A, 1)
    sin_col = np.sin(np.asarray(shfz_flat, np.float64)).astype(np.float32).reshape(A, 1)

    grid = (m_pad // m_tile, k_pad // K_TILE)
    out = pl.pallas_call(
        _angular_kernel,
        out_shape=jax.ShapeDtypeStruct((A, m_pad), jnp.float32),
        grid=grid,
        in_specs=[
            pl.BlockSpec((8, K_TILE), lambda m, k: (0, k)),
            pl.BlockSpec((8, K_TILE), lambda m, k: (0, k)),
            pl.BlockSpec((K_TILE, 1), lambda m, k: (k, 0)),
            pl.BlockSpec((A, 1), lambda m, k: (0, 0)),          # VMEM-resident consts
            pl.BlockSpec((A, 1), lambda m, k: (0, 0)),
            pl.BlockSpec((A, 1), lambda m, k: (0, 0)),
        ],
        out_specs=pl.BlockSpec((A, m_tile), lambda m, k: (0, m)),
        compiler_params=pltpu.CompilerParams(
            dimension_semantics=("parallel", "arbitrary"),
            vmem_limit_bytes=VMEM_LIMIT),
        cost_estimate=pl.CostEstimate(
            flops=int(2 * A * k_pad * m_pad + 40 * A * k_pad),
            transcendentals=int(4 * A * k_pad),
            bytes_accessed=int(4 * (17 * k_pad + 3 * A + A * m_pad))),
    )(ra_t, rb_t, idx_col, shfa_col, cos_col, sin_col)

    return jnp.transpose(out[:, :num_rows])                    # [num_rows, 32]


# ---------------------------------------------------------------------------
# NumPy references (same signatures as the Pallas wrappers)
# ---------------------------------------------------------------------------
def _cutoff_np(d, rc):
    return 0.5 * (np.cos(np.pi * d / rc) + 1.0) * (d < rc)


def radial_aev_ref(d, radial_shifts, idx0, idx1, num_rows):
    d = np.asarray(d, np.float64)[:, None]
    shifts = np.asarray(radial_shifts, np.float64)[None, :]
    feat = RADIAL_PREFACTOR * np.exp(-ETA_R * (d - shifts) ** 2) * _cutoff_np(d, RADIAL_MAX)
    out = np.zeros((num_rows, shifts.shape[1]), np.float64)
    np.add.at(out, np.asarray(idx0, np.int64), feat)
    np.add.at(out, np.asarray(idx1, np.int64), feat)
    return out.astype(np.float32)


def angular_aev_ref(ra, rb, shfa_flat, shfz_flat, idx, num_rows):
    ra = np.asarray(ra, np.float64)
    rb = np.asarray(rb, np.float64)
    da = np.linalg.norm(ra, axis=-1, keepdims=True)
    db = np.linalg.norm(rb, axis=-1, keepdims=True)
    cos_t = 0.95 * np.sum(ra * rb, -1, keepdims=True) / np.maximum(da * db, 1e-8)
    theta = np.arccos(cos_t)
    f1 = ((1.0 + np.cos(theta - np.asarray(shfz_flat)[None, :])) * 0.5) ** ZETA
    f2 = np.exp(-ETA_A * (0.5 * (da + db) - np.asarray(shfa_flat)[None, :]) ** 2)
    fc = _cutoff_np(da, ANGULAR_MAX) * _cutoff_np(db, ANGULAR_MAX)
    feat = 2.0 * f1 * f2 * fc
    out = np.zeros((num_rows, np.asarray(shfa_flat).shape[0]), np.float64)
    np.add.at(out, np.asarray(idx, np.int64), feat)
    return out.astype(np.float32)


# ---------------------------------------------------------------------------
# Host-side glue (mirrors the PyTorch module's index gymnastics)
# ---------------------------------------------------------------------------
def triu_index_np(num_species):
    s1, s2 = np.triu_indices(num_species)
    pair_index = np.arange(s1.shape[0])
    ret = np.zeros((num_species, num_species), np.int64)
    ret[s1, s2] = pair_index
    ret[s2, s1] = pair_index
    return ret


# TODO(synk): triple_by_molecule produces data-dependent (dynamic) shapes; no clean
# static-shape Pallas equivalent, so it is done on the host (semantics match torchani).
def triple_by_molecule_np(atom_index12):
    P = atom_index12.shape[1]
    flat = atom_index12.reshape(-1)          # slot s<P -> pair s atom0, s>=P -> pair s-P atom1
    central, pairs, signs = [], [], []
    for a in np.unique(flat):
        slots = np.nonzero(flat == a)[0]
        for i in range(len(slots)):
            for j in range(i):
                s_i, s_j = int(slots[i]), int(slots[j])
                central.append(int(a))
                pairs.append((s_i % P, s_j % P))
                signs.append((1 if s_i < P else -1, 1 if s_j < P else -1))
    central = np.asarray(central, np.int64)
    pair_index12 = np.asarray(pairs, np.int64).reshape(-1, 2).T
    sign12 = np.asarray(signs, np.int64).reshape(-1, 2).T
    return central, pair_index12, sign12


def ani_representation_forward(positions, atomic_species, radial_fn, angular_fn):
    """Reproduces ANIRepresentation.forward -> (species, aevs [N, 1008])."""
    pos = np.asarray(positions, np.float32)
    species = np.asarray(atomic_species, np.int64)
    N = pos.shape[0]

    # --- neighbor list == data.pair_indices / d_ij / r_ij (r_ij = pos[j]-pos[i]) ---
    ii, jj = np.triu_indices(N, k=1)
    r_all = pos[jj] - pos[ii]
    d_all = np.linalg.norm(r_all, axis=-1)
    keep = d_all < RADIAL_MAX
    pair_indices = np.stack([ii[keep], jj[keep]]).astype(np.int64)    # [2, P]
    r_ij = r_all[keep].astype(np.float32)                             # [P, 3]
    d_ij = d_all[keep].astype(np.float32)                             # [P]

    # --- radial AEV (scatter rows built in-kernel from index12) ---
    species12 = species[pair_indices]                                 # [2, P]
    index12 = pair_indices * NR_ELEMENTS + species12[::-1]            # .flip(0)
    radial_shifts = np.linspace(RADIAL_MIN, RADIAL_MAX, NUM_RADIAL + 1,
                                dtype=np.float32)[:-1]                # [16]
    radial_rows = radial_fn(d_ij, radial_shifts, index12[0], index12[1],
                            N * NR_ELEMENTS)                          # [N*7, 16]
    radial_aev = jnp.asarray(radial_rows).reshape(N, RADIAL_LENGTH)

    # --- angular preprocessing (dynamic filtering + triple enumeration on host) ---
    even_closer = np.nonzero(d_ij <= ANGULAR_MAX)[0]
    atom_index12 = pair_indices[:, even_closer]
    species12_small_pairs = species12[:, even_closer]
    r_ij_small = r_ij[even_closer]

    central_atom_index, pair_index12, sign12 = triple_by_molecule_np(atom_index12)
    species12_small = species12_small_pairs[:, pair_index12]          # [2, 2, T]
    r_ij12 = (r_ij_small[pair_index12.reshape(-1)].reshape(2, -1, 3)
              * sign12[..., None].astype(np.float32))                 # [2, T, 3]
    species12_ = np.where(sign12 == 1, species12_small[1], species12_small[0])

    triu = triu_index_np(NR_ELEMENTS)
    index = central_atom_index * NUM_SPECIES_PAIRS + triu[species12_[0], species12_[1]]

    shfa = np.linspace(ANGULAR_MIN, ANGULAR_MAX, ANGULAR_DIST_DIVISIONS + 1,
                       dtype=np.float32)[:-1]
    angle_start = np.pi / (2 * ANGLE_SECTIONS)
    shfz = (np.linspace(0.0, np.pi, ANGLE_SECTIONS + 1) + angle_start)[:-1]
    # flatten order: ShfA outer, ShfZ inner -> 32 columns
    shfa_flat = np.repeat(shfa, ANGLE_SECTIONS).astype(np.float32)
    shfz_flat = np.tile(shfz, ANGULAR_DIST_DIVISIONS).astype(np.float32)

    angular_rows = angular_fn(r_ij12[0], r_ij12[1], shfa_flat, shfz_flat,
                              index, N * NUM_SPECIES_PAIRS)           # [N*28, 32]
    angular_aev = jnp.asarray(angular_rows).reshape(N, ANGULAR_LENGTH)

    aevs = jnp.concatenate([radial_aev, angular_aev], axis=-1)        # [N, 1008]
    return jnp.asarray(species.astype(np.int32)), aevs


# ---------------------------------------------------------------------------
if __name__ == "__main__":
    key = jax.random.PRNGKey(0)
    k_pos, k_sp = jax.random.split(key)
    N_ATOMS = 8
    positions = np.asarray(jax.random.uniform(k_pos, (N_ATOMS, 3), dtype=jnp.float32)) * 0.30
    atomic_species = np.asarray(jax.random.randint(k_sp, (N_ATOMS,), 0, NR_ELEMENTS),
                                np.int32)

    sp_out, aevs = ani_representation_forward(positions, atomic_species,
                                              radial_aev_pallas, angular_aev_pallas)
    aevs = jax.block_until_ready(aevs)

    # pure NumPy reference of the same forward
    sp_ref, aevs_ref = ani_representation_forward(positions, atomic_species,
                                                  radial_aev_ref, angular_aev_ref)

    assert aevs.shape == (N_ATOMS, RADIAL_LENGTH + ANGULAR_LENGTH)
    assert np.all(np.isfinite(np.asarray(aevs)))
    np.testing.assert_array_equal(np.asarray(sp_out), np.asarray(sp_ref))
    # bf16 matmul operands -> ~0.4% relative quantization; accumulation is f32
    np.testing.assert_allclose(np.asarray(aevs), np.asarray(aevs_ref),
                               rtol=3e-2, atol=5e-4)
    print("KERNEL_OK")
</pallas_src>

<mosaic_0001>
module attributes {stable_mosaic.version = 11 : i64} {
  func.func @_radial_kernel(%arg0: i32, %arg1: i32, %arg2: memref<1x256xf32, #tpu.memory_space<vmem>>, %arg3: memref<16x1xf32, #tpu.memory_space<vmem>>, %arg4: memref<256x1xi32, #tpu.memory_space<vmem>>, %arg5: memref<256x1xi32, #tpu.memory_space<vmem>>, %arg6: memref<16x128xf32, #tpu.memory_space<vmem>>) attributes {dimension_semantics = [#tpu.dimension_semantics<parallel>, #tpu.dimension_semantics<arbitrary>], iteration_bounds = array<i64: 1, 1>, scalar_prefetch = 0 : i64, scratch_operands = 0 : i64, tpu.core_type = #tpu.core_type<tc>, window_params = [{transform_indices = @transform_0, window_bounds = array<i64: 1, 256>}, {pipeline_mode = #tpu.pipeline_mode<synchronous>, transform_indices = @transform_1, window_bounds = array<i64: 16, 1>}, {transform_indices = @transform_2, window_bounds = array<i64: 256, 1>}, {transform_indices = @transform_3, window_bounds = array<i64: 256, 1>}, {transform_indices = @transform_4, window_bounds = array<i64: 16, 128>}]} {
    %c0_i32 = arith.constant 0 : i32
    %0 = arith.cmpi eq, %arg1, %c0_i32 : i32
    %1 = arith.extui %0 : i1 to i32
    %c0_i32_0 = arith.constant 0 : i32
    %2 = arith.cmpi ne, %1, %c0_i32_0 : i32
    scf.if %2 {
      %cst_19 = arith.constant 0.000000e+00 : f32
      %51 = vector.broadcast %cst_19 : f32 to vector<16x128xf32>
      %c0_20 = arith.constant 0 : index
      %c0_21 = arith.constant 0 : index
      %52 = vector.load %arg6[%c0_20, %c0_21] : memref<16x128xf32, #tpu.memory_space<vmem>>, vector<16x128xf32>
      tpu.vector_store %arg6[%c0_20, %c0_21], %51 {strides = array<i32>} : memref<16x128xf32, #tpu.memory_space<vmem>>, vector<16x128xf32>,
    } else {
    }
    %c0 = arith.constant 0 : index
    %c0_1 = arith.constant 0 : index
    %3 = vector.load %arg2[%c0, %c0_1] : memref<1x256xf32, #tpu.memory_space<vmem>>, vector<1x256xf32>
    %c0_2 = arith.constant 0 : index
    %c0_3 = arith.constant 0 : index
    %4 = vector.load %arg3[%c0_2, %c0_3] : memref<16x1xf32, #tpu.memory_space<vmem>>, vector<16x1xf32>
    %5 = vector.broadcast %3 : vector<1x256xf32> to vector<16x256xf32>
    %6 = vector.broadcast %4 : vector<16x1xf32> to vector<16x256xf32>
    %7 = arith.subf %5, %6 : vector<16x256xf32>
    %cst = arith.constant -1.970000e+03 : f32
    %8 = vector.broadcast %cst : f32 to vector<16x256xf32>
    %9 = arith.mulf %8, %7 : vector<16x256xf32>
    %10 = arith.mulf %9, %7 : vector<16x256xf32>
    %11 = math.exp %10 : vector<16x256xf32>
    %cst_4 = arith.constant 2.500000e-01 : f32
    %12 = vector.broadcast %cst_4 : f32 to vector<16x256xf32>
    %13 = arith.mulf %12, %11 : vector<16x256xf32>
    %cst_5 = arith.constant 5.100000e-01 : f32
    %14 = vector.broadcast %cst_5 : f32 to vector<1x256xf32>
    %15 = arith.cmpf olt, %3, %14 : vector<1x256xf32>
    %cst_6 = arith.constant 6.15998554 : f32
    %16 = vector.broadcast %cst_6 : f32 to vector<1x256xf32>
    %17 = arith.mulf %3, %16 : vector<1x256xf32>
    %18 = math.cos %17 : vector<1x256xf32>
    %cst_7 = arith.constant 1.000000e+00 : f32
    %19 = vector.broadcast %cst_7 : f32 to vector<1x256xf32>
    %20 = arith.addf %18, %19 : vector<1x256xf32>
    %cst_8 = arith.constant 5.000000e-01 : f32
    %21 = vector.broadcast %cst_8 : f32 to vector<1x256xf32>
    %22 = arith.mulf %21, %20 : vector<1x256xf32>
    %cst_9 = arith.constant 0.000000e+00 : f32
    %23 = vector.broadcast %cst_9 : f32 to vector<1x256xf32>
    %24 = arith.select %15, %22, %23 : vector<1x256xi1>, vector<1x256xf32>
    %25 = vector.broadcast %24 : vector<1x256xf32> to vector<16x256xf32>
    %26 = arith.mulf %13, %25 : vector<16x256xf32>
    %27 = arith.truncf %26 : vector<16x256xf32> to vector<16x256xbf16>
    %c128_i32 = arith.constant 128 : i32
    %28 = arith.muli %arg0, %c128_i32 : i32
    %29 = tpu.iota {dimensions = array<i32: 1>} : vector<256x128xi32>
    %c0_10 = arith.constant 0 : index
    %c0_11 = arith.constant 0 : index
    %30 = vector.load %arg4[%c0_10, %c0_11] : memref<256x1xi32, #tpu.memory_space<vmem>>, vector<256x1xi32>
    %31 = vector.broadcast %28 : i32 to vector<256x1xi32>
    %32 = arith.subi %30, %31 : vector<256x1xi32>
    %33 = vector.broadcast %32 : vector<256x1xi32> to vector<256x128xi32>
    %34 = arith.cmpi eq, %29, %33 : vector<256x128xi32>
    %35 = arith.extui %34 : vector<256x128xi1> to vector<256x128xi32>
    %36 = arith.sitofp %35 : vector<256x128xi32> to vector<256x128xf32>
    %37 = arith.truncf %36 : vector<256x128xf32> to vector<256x128xbf16>
    %c0_12 = arith.constant 0 : index
    %c0_13 = arith.constant 0 : index
    %38 = vector.load %arg5[%c0_12, %c0_13] : memref<256x1xi32, #tpu.memory_space<vmem>>, vector<256x1xi32>
    %39 = vector.broadcast %28 : i32 to vector<256x1xi32>
    %40 = arith.subi %38, %39 : vector<256x1xi32>
    %41 = vector.broadcast %40 : vector<256x1xi32> to vector<256x128xi32>
    %42 = arith.cmpi eq, %29, %41 : vector<256x128xi32>
    %43 = arith.extui %42 : vector<256x128xi1> to vector<256x128xi32>
    %44 = arith.sitofp %43 : vector<256x128xi32> to vector<256x128xf32>
    %45 = arith.truncf %44 : vector<256x128xf32> to vector<256x128xbf16>
    %46 = arith.addf %37, %45 : vector<256x128xbf16>
    %c0_14 = arith.constant 0 : index
    %c0_15 = arith.constant 0 : index
    %47 = vector.load %arg6[%c0_14, %c0_15] : memref<16x128xf32, #tpu.memory_space<vmem>>, vector<16x128xf32>
    %cst_16 = arith.constant dense<0.000000e+00> : vector<16x128xf32>
    %48 = tpu.matmul %27, %46, %cst_16 {dimension_numbers = #tpu.dot_dimension_numbers<[1], [0], [0], [1], [0, 0, 1, 1], [], []>} : vector<16x256xbf16>, vector<256x128xbf16>, vector<16x128xf32> -> vector<16x128xf32>
    %49 = arith.addf %47, %48 : vector<16x128xf32>
    %c0_17 = arith.constant 0 : index
    %c0_18 = arith.constant 0 : index
    %50 = vector.load %arg6[%c0_17, %c0_18] : memref<16x128xf32, #tpu.memory_space<vmem>>, vector<16x128xf32>
    tpu.vector_store %arg6[%c0_17, %c0_18], %49 {strides = array<i32>} : memref<16x128xf32, #tpu.memory_space<vmem>>, vector<16x128xf32>,
    return
  }
  func.func @transform_0(%arg0: i32, %arg1: i32) -> (i32, i32) {
    %c0_i32 = arith.constant 0 : i32
    %c0_i32_0 = arith.constant 0 : i32
    return %c0_i32, %arg1 : i32, i32
  }
  func.func @transform_1(%arg0: i32, %arg1: i32) -> (i32, i32) {
    %c0_i32 = arith.constant 0 : i32
    %c0_i32_0 = arith.constant 0 : i32
    %c0_i32_1 = arith.constant 0 : i32
    return %c0_i32, %c0_i32_0 : i32, i32
  }
  func.func @transform_2(%arg0: i32, %arg1: i32) -> (i32, i32) {
    %c0_i32 = arith.constant 0 : i32
    %c0_i32_0 = arith.constant 0 : i32
    return %arg1, %c0_i32 : i32, i32
  }
  func.func @transform_3(%arg0: i32, %arg1: i32) -> (i32, i32) {
    %c0_i32 = arith.constant 0 : i32
    %c0_i32_0 = arith.constant 0 : i32
    return %arg1, %c0_i32 : i32, i32
  }
  func.func @transform_4(%arg0: i32, %arg1: i32) -> (i32, i32) {
    %c0_i32 = arith.constant 0 : i32
    %c0_i32_0 = arith.constant 0 : i32
    return %c0_i32, %arg0 : i32, i32
  }
}

</mosaic_0001>

<llo_original>
// kernel: tpu_custom_call.1
$region0: #{tpu_custom_call.1}
  #allocation0 [shape = 'u32[]', space=smem, size = 0x4, offset = 0x4, fixed_abs, tag = 'smem constant byte address 0x4 - core index']
  #allocation1 [shape = 'u32[144,128]{1,0:T(1,128)}', space=vmem, size = 0x12000, scoped, tag = 'internal scratch']
  %s0 = inlined_call_operand.vmem [shape: f32[1,256], index: 0, kind: input, shape index: {}]
  %s1 = inlined_call_operand.vmem [shape: f32[16,1], index: 1, kind: input, shape index: {}]
  %s2 = inlined_call_operand.vmem [shape: s32[256,1], index: 2, kind: input, shape index: {}]
  %s3 = inlined_call_operand.vmem [shape: s32[256,1], index: 3, kind: input, shape index: {}]
  %s4 = inlined_call_operand.hbm [shape: f32[16,128], index: 4, kind: output, shape index: {}]
  %s5 = sld [smem:[#allocation0]]
  $region30: #{tpu_custom_call.1} parent=0
    _
  %s7 = ssub.s32 1, %s5
  %s8 = scalar_select 0, %s7, %s5
  $region1: #{tpu_custom_call.1} parent=0
    #allocation2 [shape = 'u8[8192]{0}', space=vmem, size = 0x2000, scoped, tag = 'output window, operand 0, single buffered']
    #allocation3 [shape = 's32[1]{0}', space=sflag, size = 0x4, scoped, tag = 'scoped memory for tpu_custom_call.1']
    %9 = vsyncpa [#allocation3], 0
    // Predicated region
    $region2: #{tpu_custom_call.1} parent=1 // pred_check
      _
    $region3: #{tpu_custom_call.1} parent=1 // pred_check_branch
      %11 = sbr.rel (0) target = $region5
    $region4: #{tpu_custom_call.1} parent=1 // pred_region
      _
    $region5: #{tpu_custom_call.1} parent=1 // pred_fallthru
      _
    // Predicated region
    $region6: #{tpu_custom_call.1} parent=1 // pred_check
      _
    $region7: #{tpu_custom_call.1} parent=1 // pred_check_branch
      %13 = sbr.rel (0) target = $region9
    $region8: #{tpu_custom_call.1} parent=1 // pred_region
      _
    $region9: #{tpu_custom_call.1} parent=1 // pred_fallthru
      _
    // Predicated region
    $region10: #{tpu_custom_call.1} parent=1 // pred_check
      _
    $region11: #{tpu_custom_call.1} parent=1 // pred_check_branch
      %15 = sbr.rel (0) target = $region13
    $region12: #{tpu_custom_call.1} parent=1 // pred_region
      _
    $region13: #{tpu_custom_call.1} parent=1 // pred_fallthru
      _
    // Predicated region
    $region14: #{tpu_custom_call.1} parent=1 // pred_check
      _
    $region15: #{tpu_custom_call.1} parent=1 // pred_check_branch
      %17 = sbr.rel (0) target = $region17
    $region16: #{tpu_custom_call.1} parent=1 // pred_region
      _
    $region17: #{tpu_custom_call.1} parent=1 // pred_fallthru
      _
    %p19 = scmp.eq.s32.totalorder 0, 0
    // Predicated region
    $region18: #{tpu_custom_call.1} parent=1 // pred_check
      %p20 = pneg %p19
    $region19: #{tpu_custom_call.1} parent=1 // pred_check_branch
      %22 = sbr.rel (%p20) target = $region21
    $region20: #{tpu_custom_call.1} parent=1 // pred_region
      %23 = vst [vmem:[#allocation2] sm:$0xff] 0.0
      %24 = vst [vmem:[#allocation2 + $0x8] sm:$0xff] 0.0
    $region21: #{tpu_custom_call.1} parent=1 // pred_fallthru
      _
    %v25 = vld [vmem:[%s0] sm:$0x3]
    %v26 = vld [vmem:[%s1] sm:$0xff]
    %v27 = vld [vmem:[%s1 + $0x8] sm:$0xff]
    %v29 = vlaneseq
    %v30 = vshrl.u32 %v29, 7
    %v31 = vsub.s32 0, %v30
    %v32 = vrot.slane %v25, %v31
    %v33 = vlaneseq
    %v34 = vshrl.u32 %v33, 7
    %v35 = vsub.s32 1, %v34
    %v36 = vrot.slane %v25, %v35
    %40 = vset.pattern.permute.xlu0 0
    %41 = vperm.xlu0 %40, %v26
    %v42 = vpop.permute.xlu0 %41
    %45 = vset.pattern.permute.xlu0 0
    %46 = vperm.xlu0 %45, %v27
    %v47 = vpop.permute.xlu0 %46
    %v49 = vsub.f32 %v32, %v42
    %v50 = vsub.f32 %v36, %v42
    %v51 = vsub.f32 %v32, %v47
    %v52 = vsub.f32 %v36, %v47
    %v53 = vmul.f32 %v49, -1970.0
    %v54 = vmul.f32 %v50, -1970.0
    %v55 = vmul.f32 %v51, -1970.0
    %v56 = vmul.f32 %v52, -1970.0
    %v57 = vmul.f32 %v53, %v49
    %v58 = vmul.f32 %v54, %v50
    %v59 = vmul.f32 %v55, %v51
    %v60 = vmul.f32 %v56, %v52
    %v61 = vmul.f32 %v57, 1.442695
    %v62 = vpow.pop %v61
    %v63 = vmul.f32 %v58, 1.442695
    %v64 = vpow.pop %v63
    %v65 = vmul.f32 %v59, 1.442695
    %v66 = vpow.pop %v65
    %v67 = vmul.f32 %v60, 1.442695
    %v68 = vpow.pop %v67
    %v69 = vmul.f32 %v62, 0.25
    %v70 = vmul.f32 %v64, 0.25
    %v71 = vmul.f32 %v66, 0.25
    %v72 = vmul.f32 %v68, 0.25
    %vm73 = vcmp.lt.f32.partialorder %v25, 0.51
    %v74 = vmul.f32 %v25, 6.1599855
    %v75 = vand.u32 2147483647, %v74
    %vm76 = vcmp.le.f32.partialorder %v75, 0.7853982
    %vm77 = vcmp.lt.s32.totalorder %v74, 0
    %v78 = vand.u32 %v74, 2139095040
    %v79 = vshrl.u32 %v78, 23
    %v80 = vsub.s32 %v79, 127
    %v81 = vand.u32 2147483647, %v74
    %v82 = vand.u32 %v81, 8388607
    %v83 = vor.u32 %v82, 8388608
    %v84 = vsub.s32 0, %v83
    %v85 = vadd.s32 %v80, 1
    %vm86 = vcmp.gt.s32.totalorder %v85, 0
    %v87 = vsel %vm86, %v85, 0
    %v88 = vshrl.u32 %v87, 5
    %v89 = vand.u32 %v87, 31
    %v90 = vsub.s32 32, %v89
    %v91 = vshrl.u32 683565275, %v90
    %v92 = vshll.u32 683565275, %v89
    %v93 = vshrl.u32 2475754826, %v90
    %v94 = vor.u32 %v92, %v93
    %v95 = vshll.u32 2475754826, %v89
    %v96 = vshrl.u32 2131351028, %v90
    %v97 = vor.u32 %v95, %v96
    %v98 = vshll.u32 2131351028, %v89
    %v99 = vshrl.u32 2102212464, %v90
    %v100 = vor.u32 %v98, %v99
    %v101 = vshll.u32 2102212464, %v89
    %v102 = vshrl.u32 920167782, %v90
    %v103 = vor.u32 %v101, %v102
    %v104 = vshll.u32 920167782, %v89
    %v105 = vshrl.u32 1326507024, %v90
    %v106 = vor.u32 %v104, %v105
    %vm107 = vcmp.lt.s32.totalorder %v88, 1
    %vm108 = vcmp.lt.s32.totalorder %v88, 2
    %vm109 = vcmp.lt.s32.totalorder %v88, 3
    %vm110 = vcmp.lt.s32.totalorder %v88, 4
    %v111 = vsel %vm107, %v91, %v94
    %v112 = vsel %vm110, %v100, 2102212464
    %v113 = vsel %vm109, %v97, %v112
    %v114 = vsel %vm108, %v111, %v113
    %v115 = vsel %vm107, %v94, %v97
    %v116 = vsel %vm110, %v103, 920167782
    %v117 = vsel %vm109, %v100, %v116
    %v118 = vsel %vm108, %v115, %v117
    %v119 = vsel %vm107, %v97, %v100
    %v120 = vsel %vm110, %v106, 1326507024
    %v121 = vsel %vm109, %v103, %v120
    %v122 = vsel %vm108, %v119, %v121
    %v123 = vshll.u32 %v83, 8
    %v124 = vmul.u32.u64.compose %v123, %v122
    %v125 = vextract.low.u32 %v124
    %v126 = vextract.high.u32 %v124
    %v127 = vmul.u32.u64.compose %v123, %v118
    %v128 = vextract.low.u32 %v127
    %v129 = vextract.high.u32 %v127
    %v130 = vmul.u32 %v123, %v114
    %v131 = vadd.s32 %v126, %v128
    %vm132 = vc.u32 %v126, %v128
    %v133 = vadd.s32 %v129, 1
    %v134 = vsel %vm132, %v133, %v129
    %v135 = vadd.s32 %v130, %v134
    %v136 = vadd.s32 %v135, 536870912
    %v137 = vshrl.u32 %v136, 30
    %v138 = vshll.u32 %v137, 30
    %v139 = vsub.s32 %v135, %v138
    %vm140 = vcmp.lt.s32.totalorder %v139, 0
    %v141 = vsub.s32 0, %v139
    %v142 = vsel %vm140, %v141, %v139
    %v143 = vclz %v142
    %v144 = vsub.s32 %v143, 2
    %vm145 = vcmp.gt.s32.totalorder 0, %v144
    %v146 = vsel %vm145, 0, %v144
    %v147 = vsub.s32 32, %v146
    %v148 = vshll.u32 %v139, %v146
    %v149 = vshrl.u32 %v131, %v147
    %v150 = vor.u32 %v148, %v149
    %v151 = vsub.s32 4294967266, %v146
    %v152 = vadd.s32 %v151, 127
    %v153 = vshll.u32 %v152, 23
    %v154 = vor.u32 4788187, %v153
    %v155 = vand.u32 2147483647, %v154
    %v157 = vcvt.s32.f32 %v150
    %v158 = vmul.f32 %v157, %v155
    %v159 = vxor.u32 %v158, 2147483648
    %v160 = vsel %vm77, %v159, %v158
    %v161 = vsub.s32 4, %v137
    %v162 = vsel %vm77, %v161, %v137
    %v163 = vsel %vm76, %v74, %v160
    %v164 = vsel %vm76, 0, %v162
    %v165 = vcosq.f32.pop %v163
    %v166 = vsinq.f32.pop %v163
    %vm167 = vweird.f32 %v74
    %v168 = vand.u32 %v164, 3
    %vm169 = vcmp.lt.s32.totalorder %v168, 2
    %vm170 = vcmp.eq.s32.totalorder %v168, 0
    %v171 = vxor.u32 %v166, 2147483648
    %v172 = vsel %vm170, %v165, %v171
    %vm173 = vcmp.eq.s32.totalorder %v168, 2
    %v174 = vxor.u32 %v165, 2147483648
    %v175 = vsel %vm173, %v174, %v166
    %v176 = vsel %vm169, %v172, %v175
    %v177 = vsel %vm167, nan, %v176
    %v178 = vadd.f32 %v177, 1.0
    %v179 = vmul.f32 %v178, 0.5
    %v180 = vsel %vm73, %v179, 0.0
    %v182 = vlaneseq
    %v183 = vshrl.u32 %v182, 7
    %v184 = vsub.s32 0, %v183
    %v185 = vrot.slane %v180, %v184
    %v186 = vlaneseq
    %v187 = vshrl.u32 %v186, 7
    %v188 = vsub.s32 1, %v187
    %v189 = vrot.slane %v180, %v188
    %v192 = vmul.f32 %v69, %v185
    %v193 = vmul.f32 %v70, %v189
    %v194 = vmul.f32 %v71, %v185
    %v195 = vmul.f32 %v72, %v189
    %v196 = vpack.c.bf16 %v194, %v192
    %v197 = vpack.c.bf16 %v195, %v193
    %s198 = smul.u32 0, 128
    %v199 = vlaneseq
    %v200 = vand.u32 %v199, 127
    %v201 = vld [vmem:[%s2] sm:$0xff]
    %v202 = vld [vmem:[%s2 + $0x8] sm:$0xff]
    %v203 = vld [vmem:[%s2 + $0x10] sm:$0xff]
    %v204 = vld [vmem:[%s2 + $0x18] sm:$0xff]
    %v205 = vld [vmem:[%s2 + $0x20] sm:$0xff]
    %v206 = vld [vmem:[%s2 + $0x28] sm:$0xff]
    %v207 = vld [vmem:[%s2 + $0x30] sm:$0xff]
    %v208 = vld [vmem:[%s2 + $0x38] sm:$0xff]
    %v209 = vld [vmem:[%s2 + $0x40] sm:$0xff]
    %v210 = vld [vmem:[%s2 + $0x48] sm:$0xff]
    %v211 = vld [vmem:[%s2 + $0x50] sm:$0xff]
    %v212 = vld [vmem:[%s2 + $0x58] sm:$0xff]
    %v213 = vld [vmem:[%s2 + $0x60] sm:$0xff]
    %v214 = vld [vmem:[%s2 + $0x68] sm:$0xff]
    %v215 = vld [vmem:[%s2 + $0x70] sm:$0xff]
    %v216 = vld [vmem:[%s2 + $0x78] sm:$0xff]
    %v217 = vld [vmem:[%s2 + $0x80] sm:$0xff]
    %v218 = vld [vmem:[%s2 + $0x88] sm:$0xff]
    %v219 = vld [vmem:[%s2 + $0x90] sm:$0xff]
    %v220 = vld [vmem:[%s2 + $0x98] sm:$0xff]
    %v221 = vld [vmem:[%s2 + $0xa0] sm:$0xff]
    %v222 = vld [vmem:[%s2 + $0xa8] sm:$0xff]
    %v223 = vld [vmem:[%s2 + $0xb0] sm:$0xff]
    %v224 = vld [vmem:[%s2 + $0xb8] sm:$0xff]
    %v225 = vld [vmem:[%s2 + $0xc0] sm:$0xff]
    %v226 = vld [vmem:[%s2 + $0xc8] sm:$0xff]
    %v227 = vld [vmem:[%s2 + $0xd0] sm:$0xff]
    %v228 = vld [vmem:[%s2 + $0xd8] sm:$0xff]
    %v229 = vld [vmem:[%s2 + $0xe0] sm:$0xff]
    %v230 = vld [vmem:[%s2 + $0xe8] sm:$0xff]
    %v231 = vld [vmem:[%s2 + $0xf0] sm:$0xff]
    %v232 = vld [vmem:[%s2 + $0xf8] sm:$0xff]
    %v233 = vstv %s198
    %v234 = vsub.s32 %v201, %v233
    %v235 = vsub.s32 %v202, %v233
    %v236 = vsub.s32 %v203, %v233
    %v237 = vsub.s32 %v204, %v233
    %v238 = vsub.s32 %v205, %v233
    %v239 = vsub.s32 %v206, %v233
    %v240 = vsub.s32 %v207, %v233
    %v241 = vsub.s32 %v208, %v233
    %v242 = vsub.s32 %v209, %v233
    %v243 = vsub.s32 %v210, %v233
    %v244 = vsub.s32 %v211, %v233
    %v245 = vsub.s32 %v212, %v233
    %v246 = vsub.s32 %v213, %v233
    %v247 = vsub.s32 %v214, %v233
    %v248 = vsub.s32 %v215, %v233
    %v249 = vsub.s32 %v216, %v233
    %v250 = vsub.s32 %v217, %v233
    %v251 = vsub.s32 %v218, %v233
    %v252 = vsub.s32 %v219, %v233
    %v253 = vsub.s32 %v220, %v233
    %v254 = vsub.s32 %v221, %v233
    %v255 = vsub.s32 %v222, %v233
    %v256 = vsub.s32 %v223, %v233
    %v257 = vsub.s32 %v224, %v233
    %v258 = vsub.s32 %v225, %v233
    %v259 = vsub.s32 %v226, %v233
    %v260 = vsub.s32 %v227, %v233
    %v261 = vsub.s32 %v228, %v233
    %v262 = vsub.s32 %v229, %v233
    %v263 = vsub.s32 %v230, %v233
    %v264 = vsub.s32 %v231, %v233
    %v265 = vsub.s32 %v232, %v233
    %266 = vset.pattern.permute.xlu0 0
    %267 = vperm.xlu0 %266, %v234
    %v268 = vpop.permute.xlu0 %267
    %269 = vset.pattern.permute.xlu0 0
    %270 = vperm.xlu0 %269, %v235
    %v271 = vpop.permute.xlu0 %270
    %272 = vset.pattern.permute.xlu0 0
    %273 = vperm.xlu0 %272, %v236
    %v274 = vpop.permute.xlu0 %273
    %275 = vset.pattern.permute.xlu0 0
    %276 = vperm.xlu0 %275, %v237
    %v277 = vpop.permute.xlu0 %276
    %278 = vset.pattern.permute.xlu0 0
    %279 = vperm.xlu0 %278, %v238
    %v280 = vpop.permute.xlu0 %279
    %281 = vset.pattern.permute.xlu0 0
    %282 = vperm.xlu0 %281, %v239
    %v283 = vpop.permute.xlu0 %282
    %284 = vset.pattern.permute.xlu0 0
    %285 = vperm.xlu0 %284, %v240
    %v286 = vpop.permute.xlu0 %285
    %287 = vset.pattern.permute.xlu0 0
    %288 = vperm.xlu0 %287, %v241
    %v289 = vpop.permute.xlu0 %288
    %290 = vset.pattern.permute.xlu0 0
    %291 = vperm.xlu0 %290, %v242
    %v292 = vpop.permute.xlu0 %291
    %293 = vset.pattern.permute.xlu0 0
    %294 = vperm.xlu0 %293, %v243
    %v295 = vpop.permute.xlu0 %294
    %296 = vset.pattern.permute.xlu0 0
    %297 = vperm.xlu0 %296, %v244
    %v298 = vpop.permute.xlu0 %297
    %299 = vset.pattern.permute.xlu0 0
    %300 = vperm.xlu0 %299, %v245
    %v301 = vpop.permute.xlu0 %300
    %302 = vset.pattern.permute.xlu0 0
    %303 = vperm.xlu0 %302, %v246
    %v304 = vpop.permute.xlu0 %303
    %305 = vset.pattern.permute.xlu0 0
    %306 = vperm.xlu0 %305, %v247
    %v307 = vpop.permute.xlu0 %306
    %308 = vset.pattern.permute.xlu0 0
    %309 = vperm.xlu0 %308, %v248
    %v310 = vpop.permute.xlu0 %309
    %311 = vset.pattern.permute.xlu0 0
    %312 = vperm.xlu0 %311, %v249
    %v313 = vpop.permute.xlu0 %312
    %314 = vset.pattern.permute.xlu0 0
    %315 = vperm.xlu0 %314, %v250
    %v316 = vpop.permute.xlu0 %315
    %317 = vset.pattern.permute.xlu0 0
    %318 = vperm.xlu0 %317, %v251
    %v319 = vpop.permute.xlu0 %318
    %320 = vset.pattern.permute.xlu0 0
    %321 = vperm.xlu0 %320, %v252
    %v322 = vpop.permute.xlu0 %321
    %323 = vset.pattern.permute.xlu0 0
    %324 = vperm.xlu0 %323, %v253
    %v325 = vpop.permute.xlu0 %324
    %326 = vset.pattern.permute.xlu0 0
    %327 = vperm.xlu0 %326, %v254
    %v328 = vpop.permute.xlu0 %327
    %329 = vset.pattern.permute.xlu0 0
    %330 = vperm.xlu0 %329, %v255
    %v331 = vpop.permute.xlu0 %330
    %332 = vset.pattern.permute.xlu0 0
    %333 = vperm.xlu0 %332, %v256
    %v334 = vpop.permute.xlu0 %333
    %335 = vset.pattern.permute.xlu0 0
    %336 = vperm.xlu0 %335, %v257
    %v337 = vpop.permute.xlu0 %336
    %338 = vset.pattern.permute.xlu0 0
    %339 = vperm.xlu0 %338, %v258
    %v340 = vpop.permute.xlu0 %339
    %341 = vset.pattern.permute.xlu0 0
    %342 = vperm.xlu0 %341, %v259
    %v343 = vpop.permute.xlu0 %342
    %344 = vset.pattern.permute.xlu0 0
    %345 = vperm.xlu0 %344, %v260
    %v346 = vpop.permute.xlu0 %345
    %347 = vset.pattern.permute.xlu0 0
    %348 = vperm.xlu0 %347, %v261
    %v349 = vpop.permute.xlu0 %348
    %350 = vset.pattern.permute.xlu0 0
    %351 = vperm.xlu0 %350, %v262
    %v352 = vpop.permute.xlu0 %351
    %353 = vset.pattern.permute.xlu0 0
    %354 = vperm.xlu0 %353, %v263
    %v355 = vpop.permute.xlu0 %354
    %356 = vset.pattern.permute.xlu0 0
    %357 = vperm.xlu0 %356, %v264
    %v358 = vpop.permute.xlu0 %357
    %359 = vset.pattern.permute.xlu0 0
    %360 = vperm.xlu0 %359, %v265
    %v361 = vpop.permute.xlu0 %360
    %vm362 = vcmp.eq.s32.totalorder %v200, %v268
    %vm363 = vcmp.eq.s32.totalorder %v200, %v271
    %vm364 = vcmp.eq.s32.totalorder %v200, %v274
    %vm365 = vcmp.eq.s32.totalorder %v200, %v277
    %vm366 = vcmp.eq.s32.totalorder %v200, %v280
    %vm367 = vcmp.eq.s32.totalorder %v200, %v283
    %vm368 = vcmp.eq.s32.totalorder %v200, %v286
    %vm369 = vcmp.eq.s32.totalorder %v200, %v289
    %vm370 = vcmp.eq.s32.totalorder %v200, %v292
    %vm371 = vcmp.eq.s32.totalorder %v200, %v295
    %vm372 = vcmp.eq.s32.totalorder %v200, %v298
    %vm373 = vcmp.eq.s32.totalorder %v200, %v301
    %vm374 = vcmp.eq.s32.totalorder %v200, %v304
    %vm375 = vcmp.eq.s32.totalorder %v200, %v307
    %vm376 = vcmp.eq.s32.totalorder %v200, %v310
    %vm377 = vcmp.eq.s32.totalorder %v200, %v313
    %vm378 = vcmp.eq.s32.totalorder %v200, %v316
    %vm379 = vcmp.eq.s32.totalorder %v200, %v319
    %vm380 = vcmp.eq.s32.totalorder %v200, %v322
    %vm381 = vcmp.eq.s32.totalorder %v200, %v325
    %vm382 = vcmp.eq.s32.totalorder %v200, %v328
    %vm383 = vcmp.eq.s32.totalorder %v200, %v331
    %vm384 = vcmp.eq.s32.totalorder %v200, %v334
    %vm385 = vcmp.eq.s32.totalorder %v200, %v337
    %vm386 = vcmp.eq.s32.totalorder %v200, %v340
    %vm387 = vcmp.eq.s32.totalorder %v200, %v343
    %vm388 = vcmp.eq.s32.totalorder %v200, %v346
    %vm389 = vcmp.eq.s32.totalorder %v200, %v349
    %vm390 = vcmp.eq.s32.totalorder %v200, %v352
    %vm391 = vcmp.eq.s32.totalorder %v200, %v355
    %vm392 = vcmp.eq.s32.totalorder %v200, %v358
    %vm393 = vcmp.eq.s32.totalorder %v200, %v361
    %v394 = vsel %vm362, 1, 0
    %v395 = vsel %vm363, 1, 0
    %v396 = vsel %vm364, 1, 0
    %v397 = vsel %vm365, 1, 0
    %v398 = vsel %vm366, 1, 0
    %v399 = vsel %vm367, 1, 0
    %v400 = vsel %vm368, 1, 0
    %v401 = vsel %vm369, 1, 0
    %v402 = vsel %vm370, 1, 0
    %v403 = vsel %vm371, 1, 0
    %v404 = vsel %vm372, 1, 0
    %v405 = vsel %vm373, 1, 0
    %v406 = vsel %vm374, 1, 0
    %v407 = vsel %vm375, 1, 0
    %v408 = vsel %vm376, 1, 0
    %v409 = vsel %vm377, 1, 0
    %v410 = vsel %vm378, 1, 0
    %v411 = vsel %vm379, 1, 0
    %v412 = vsel %vm380, 1, 0
    %v413 = vsel %vm381, 1, 0
    %v414 = vsel %vm382, 1, 0
    %v415 = vsel %vm383, 1, 0
    %v416 = vsel %vm384, 1, 0
    %v417 = vsel %vm385, 1, 0
    %v418 = vsel %vm386, 1, 0
    %v419 = vsel %vm387, 1, 0
    %v420 = vsel %vm388, 1, 0
    %v421 = vsel %vm389, 1, 0
    %v422 = vsel %vm390, 1, 0
    %v423 = vsel %vm391, 1, 0
    %v424 = vsel %vm392, 1, 0
    %v425 = vsel %vm393, 1, 0
    %v426 = vcvt.s32.f32 %v394
    %v427 = vcvt.s32.f32 %v395
    %v428 = vcvt.s32.f32 %v396
    %v429 = vcvt.s32.f32 %v397
    %v430 = vcvt.s32.f32 %v398
    %v431 = vcvt.s32.f32 %v399
    %v432 = vcvt.s32.f32 %v400
    %v433 = vcvt.s32.f32 %v401
    %v434 = vcvt.s32.f32 %v402
    %v435 = vcvt.s32.f32 %v403
    %v436 = vcvt.s32.f32 %v404
    %v437 = vcvt.s32.f32 %v405
    %v438 = vcvt.s32.f32 %v406
    %v439 = vcvt.s32.f32 %v407
    %v440 = vcvt.s32.f32 %v408
    %v441 = vcvt.s32.f32 %v409
    %v442 = vcvt.s32.f32 %v410
    %v443 = vcvt.s32.f32 %v411
    %v444 = vcvt.s32.f32 %v412
    %v445 = vcvt.s32.f32 %v413
    %v446 = vcvt.s32.f32 %v414
    %v447 = vcvt.s32.f32 %v415
    %v448 = vcvt.s32.f32 %v416
    %v449 = vcvt.s32.f32 %v417
    %v450 = vcvt.s32.f32 %v418
    %v451 = vcvt.s32.f32 %v419
    %v452 = vcvt.s32.f32 %v420
    %v453 = vcvt.s32.f32 %v421
    %v454 = vcvt.s32.f32 %v422
    %v455 = vcvt.s32.f32 %v423
    %v456 = vcvt.s32.f32 %v424
    %v457 = vcvt.s32.f32 %v425
    %v458 = vpack.c.bf16 %v427, %v426
    %v459 = vpack.c.bf16 %v429, %v428
    %v460 = vpack.c.bf16 %v431, %v430
    %v461 = vpack.c.bf16 %v433, %v432
    %v462 = vpack.c.bf16 %v435, %v434
    %v463 = vpack.c.bf16 %v437, %v436
    %v464 = vpack.c.bf16 %v439, %v438
    %v465 = vpack.c.bf16 %v441, %v440
    %v466 = vpack.c.bf16 %v443, %v442
    %v467 = vpack.c.bf16 %v445, %v444
    %v468 = vpack.c.bf16 %v447, %v446
    %v469 = vpack.c.bf16 %v449, %v448
    %v470 = vpack.c.bf16 %v451, %v450
    %v471 = vpack.c.bf16 %v453, %v452
    %v472 = vpack.c.bf16 %v455, %v454
    %v473 = vpack.c.bf16 %v457, %v456
    %v474 = vld [vmem:[%s3] sm:$0xff]
    %v475 = vld [vmem:[%s3 + $0x8] sm:$0xff]
    %v476 = vld [vmem:[%s3 + $0x10] sm:$0xff]
    %v477 = vld [vmem:[%s3 + $0x18] sm:$0xff]
    %v478 = vld [vmem:[%s3 + $0x20] sm:$0xff]
    %v479 = vld [vmem:[%s3 + $0x28] sm:$0xff]
    %v480 = vld [vmem:[%s3 + $0x30] sm:$0xff]
    %v481 = vld [vmem:[%s3 + $0x38] sm:$0xff]
    %v482 = vld [vmem:[%s3 + $0x40] sm:$0xff]
    %v483 = vld [vmem:[%s3 + $0x48] sm:$0xff]
    %v484 = vld [vmem:[%s3 + $0x50] sm:$0xff]
    %v485 = vld [vmem:[%s3 + $0x58] sm:$0xff]
    %v486 = vld [vmem:[%s3 + $0x60] sm:$0xff]
    %v487 = vld [vmem:[%s3 + $0x68] sm:$0xff]
    %v488 = vld [vmem:[%s3 + $0x70] sm:$0xff]
    %v489 = vld [vmem:[%s3 + $0x78] sm:$0xff]
    %v490 = vld [vmem:[%s3 + $0x80] sm:$0xff]
    %v491 = vld [vmem:[%s3 + $0x88] sm:$0xff]
    %v492 = vld [vmem:[%s3 + $0x90] sm:$0xff]
    %v493 = vld [vmem:[%s3 + $0x98] sm:$0xff]
    %v494 = vld [vmem:[%s3 + $0xa0] sm:$0xff]
    %v495 = vld [vmem:[%s3 + $0xa8] sm:$0xff]
    %v496 = vld [vmem:[%s3 + $0xb0] sm:$0xff]
    %v497 = vld [vmem:[%s3 + $0xb8] sm:$0xff]
    %v498 = vld [vmem:[%s3 + $0xc0] sm:$0xff]
    %v499 = vld [vmem:[%s3 + $0xc8] sm:$0xff]
    %v500 = vld [vmem:[%s3 + $0xd0] sm:$0xff]
    %v501 = vld [vmem:[%s3 + $0xd8] sm:$0xff]
    %v502 = vld [vmem:[%s3 + $0xe0] sm:$0xff]
    %v503 = vld [vmem:[%s3 + $0xe8] sm:$0xff]
    %v504 = vld [vmem:[%s3 + $0xf0] sm:$0xff]
    %v505 = vld [vmem:[%s3 + $0xf8] sm:$0xff]
    %v506 = vsub.s32 %v474, %v233
    %v507 = vsub.s32 %v475, %v233
    %v508 = vsub.s32 %v476, %v233
    %v509 = vsub.s32 %v477, %v233
    %v510 = vsub.s32 %v478, %v233
    %v511 = vsub.s32 %v479, %v233
    %v512 = vsub.s32 %v480, %v233
    %v513 = vsub.s32 %v481, %v233
    %v514 = vsub.s32 %v482, %v233
    %v515 = vsub.s32 %v483, %v233
    %v516 = vsub.s32 %v484, %v233
    %v517 = vsub.s32 %v485, %v233
    %v518 = vsub.s32 %v486, %v233
    %v519 = vsub.s32 %v487, %v233
    %v520 = vsub.s32 %v488, %v233
    %v521 = vsub.s32 %v489, %v233
    %v522 = vsub.s32 %v490, %v233
    %v523 = vsub.s32 %v491, %v233
    %v524 = vsub.s32 %v492, %v233
    %v525 = vsub.s32 %v493, %v233
    %v526 = vsub.s32 %v494, %v233
    %v527 = vsub.s32 %v495, %v233
    %v528 = vsub.s32 %v496, %v233
    %v529 = vsub.s32 %v497, %v233
    %v530 = vsub.s32 %v498, %v233
    %v531 = vsub.s32 %v499, %v233
    %v532 = vsub.s32 %v500, %v233
    %v533 = vsub.s32 %v501, %v233
    %v534 = vsub.s32 %v502, %v233
    %v535 = vsub.s32 %v503, %v233
    %v536 = vsub.s32 %v504, %v233
    %v537 = vsub.s32 %v505, %v233
    %538 = vset.pattern.permute.xlu0 0
    %539 = vperm.xlu0 %538, %v506
    %v540 = vpop.permute.xlu0 %539
    %541 = vset.pattern.permute.xlu0 0
    %542 = vperm.xlu0 %541, %v507
    %v543 = vpop.permute.xlu0 %542
    %544 = vset.pattern.permute.xlu0 0
    %545 = vperm.xlu0 %544, %v508
    %v546 = vpop.permute.xlu0 %545
    %547 = vset.pattern.permute.xlu0 0
    %548 = vperm.xlu0 %547, %v509
    %v549 = vpop.permute.xlu0 %548
    %550 = vset.pattern.permute.xlu0 0
    %551 = vperm.xlu0 %550, %v510
    %v552 = vpop.permute.xlu0 %551
    %553 = vset.pattern.permute.xlu0 0
    %554 = vperm.xlu0 %553, %v511
    %v555 = vpop.permute.xlu0 %554
    %556 = vset.pattern.permute.xlu0 0
    %557 = vperm.xlu0 %556, %v512
    %v558 = vpop.permute.xlu0 %557
    %559 = vset.pattern.permute.xlu0 0
    %560 = vperm.xlu0 %559, %v513
    %v561 = vpop.permute.xlu0 %560
    %562 = vset.pattern.permute.xlu0 0
    %563 = vperm.xlu0 %562, %v514
    %v564 = vpop.permute.xlu0 %563
    %565 = vset.pattern.permute.xlu0 0
    %566 = vperm.xlu0 %565, %v515
    %v567 = vpop.permute.xlu0 %566
    %568 = vset.pattern.permute.xlu0 0
    %569 = vperm.xlu0 %568, %v516
    %v570 = vpop.permute.xlu0 %569
    %571 = vset.pattern.permute.xlu0 0
    %572 = vperm.xlu0 %571, %v517
    %v573 = vpop.permute.xlu0 %572
    %574 = vset.pattern.permute.xlu0 0
    %575 = vperm.xlu0 %574, %v518
    %v576 = vpop.permute.xlu0 %575
    %577 = vset.pattern.permute.xlu0 0
    %578 = vperm.xlu0 %577, %v519
    %v579 = vpop.permute.xlu0 %578
    %580 = vset.pattern.permute.xlu0 0
    %581 = vperm.xlu0 %580, %v520
    %v582 = vpop.permute.xlu0 %581
    %583 = vset.pattern.permute.xlu0 0
    %584 = vperm.xlu0 %583, %v521
    %v585 = vpop.permute.xlu0 %584
    %586 = vset.pattern.permute.xlu0 0
    %587 = vperm.xlu0 %586, %v522
    %v588 = vpop.permute.xlu0 %587
    %589 = vset.pattern.permute.xlu0 0
    %590 = vperm.xlu0 %589, %v523
    %v591 = vpop.permute.xlu0 %590
    %592 = vset.pattern.permute.xlu0 0
    %593 = vperm.xlu0 %592, %v524
    %v594 = vpop.permute.xlu0 %593
    %595 = vset.pattern.permute.xlu0 0
    %596 = vperm.xlu0 %595, %v525
    %v597 = vpop.permute.xlu0 %596
    %598 = vset.pattern.permute.xlu0 0
    %599 = vperm.xlu0 %598, %v526
    %v600 = vpop.permute.xlu0 %599
    %601 = vset.pattern.permute.xlu0 0
    %602 = vperm.xlu0 %601, %v527
    %v603 = vpop.permute.xlu0 %602
    %604 = vset.pattern.permute.xlu0 0
    %605 = vperm.xlu0 %604, %v528
    %v606 = vpop.permute.xlu0 %605
    %607 = vset.pattern.permute.xlu0 0
    %608 = vperm.xlu0 %607, %v529
    %v609 = vpop.permute.xlu0 %608
    %610 = vset.pattern.permute.xlu0 0
    %611 = vperm.xlu0 %610, %v530
    %v612 = vpop.permute.xlu0 %611
    %613 = vset.pattern.permute.xlu0 0
    %614 = vperm.xlu0 %613, %v531
    %v615 = vpop.permute.xlu0 %614
    %616 = vset.pattern.permute.xlu0 0
    %617 = vperm.xlu0 %616, %v532
    %v618 = vpop.permute.xlu0 %617
    %619 = vset.pattern.permute.xlu0 0
    %620 = vperm.xlu0 %619, %v533
    %v621 = vpop.permute.xlu0 %620
    %622 = vset.pattern.permute.xlu0 0
    %623 = vperm.xlu0 %622, %v534
    %v624 = vpop.permute.xlu0 %623
    %625 = vset.pattern.permute.xlu0 0
    %626 = vperm.xlu0 %625, %v535
    %v627 = vpop.permute.xlu0 %626
    %628 = vset.pattern.permute.xlu0 0
    %629 = vperm.xlu0 %628, %v536
    %v630 = vpop.permute.xlu0 %629
    %631 = vset.pattern.permute.xlu0 0
    %632 = vperm.xlu0 %631, %v537
    %v633 = vpop.permute.xlu0 %632
    %vm634 = vcmp.eq.s32.totalorder %v200, %v540
    %vm635 = vcmp.eq.s32.totalorder %v200, %v543
    %vm636 = vcmp.eq.s32.totalorder %v200, %v546
    %vm637 = vcmp.eq.s32.totalorder %v200, %v549
    %vm638 = vcmp.eq.s32.totalorder %v200, %v552
    %vm639 = vcmp.eq.s32.totalorder %v200, %v555
    %vm640 = vcmp.eq.s32.totalorder %v200, %v558
    %vm641 = vcmp.eq.s32.totalorder %v200, %v561
    %vm642 = vcmp.eq.s32.totalorder %v200, %v564
    %vm643 = vcmp.eq.s32.totalorder %v200, %v567
    %vm644 = vcmp.eq.s32.totalorder %v200, %v570
    %vm645 = vcmp.eq.s32.totalorder %v200, %v573
    %vm646 = vcmp.eq.s32.totalorder %v200, %v576
    %vm647 = vcmp.eq.s32.totalorder %v200, %v579
    %vm648 = vcmp.eq.s32.totalorder %v200, %v582
    %vm649 = vcmp.eq.s32.totalorder %v200, %v585
    %vm650 = vcmp.eq.s32.totalorder %v200, %v588
    %vm651 = vcmp.eq.s32.totalorder %v200, %v591
    %vm652 = vcmp.eq.s32.totalorder %v200, %v594
    %vm653 = vcmp.eq.s32.totalorder %v200, %v597
    %vm654 = vcmp.eq.s32.totalorder %v200, %v600
    %vm655 = vcmp.eq.s32.totalorder %v200, %v603
    %vm656 = vcmp.eq.s32.totalorder %v200, %v606
    %vm657 = vcmp.eq.s32.totalorder %v200, %v609
    %vm658 = vcmp.eq.s32.totalorder %v200, %v612
    %vm659 = vcmp.eq.s32.totalorder %v200, %v615
    %vm660 = vcmp.eq.s32.totalorder %v200, %v618
    %vm661 = vcmp.eq.s32.totalorder %v200, %v621
    %vm662 = vcmp.eq.s32.totalorder %v200, %v624
    %vm663 = vcmp.eq.s32.totalorder %v200, %v627
    %vm664 = vcmp.eq.s32.totalorder %v200, %v630
    %vm665 = vcmp.eq.s32.totalorder %v200, %v633
    %v666 = vsel %vm634, 1, 0
    %v667 = vsel %vm635, 1, 0
    %v668 = vsel %vm636, 1, 0
    %v669 = vsel %vm637, 1, 0
    %v670 = vsel %vm638, 1, 0
    %v671 = vsel %vm639, 1, 0
    %v672 = vsel %vm640, 1, 0
    %v673 = vsel %vm641, 1, 0
    %v674 = vsel %vm642, 1, 0
    %v675 = vsel %vm643, 1, 0
    %v676 = vsel %vm644, 1, 0
    %v677 = vsel %vm645, 1, 0
    %v678 = vsel %vm646, 1, 0
    %v679 = vsel %vm647, 1, 0
    %v680 = vsel %vm648, 1, 0
    %v681 = vsel %vm649, 1, 0
    %v682 = vsel %vm650, 1, 0
    %v683 = vsel %vm651, 1, 0
    %v684 = vsel %vm652, 1, 0
    %v685 = vsel %vm653, 1, 0
    %v686 = vsel %vm654, 1, 0
    %v687 = vsel %vm655, 1, 0
    %v688 = vsel %vm656, 1, 0
    %v689 = vsel %vm657, 1, 0
    %v690 = vsel %vm658, 1, 0
    %v691 = vsel %vm659, 1, 0
    %v692 = vsel %vm660, 1, 0
    %v693 = vsel %vm661, 1, 0
    %v694 = vsel %vm662, 1, 0
    %v695 = vsel %vm663, 1, 0
    %v696 = vsel %vm664, 1, 0
    %v697 = vsel %vm665, 1, 0
    %v698 = vcvt.s32.f32 %v666
    %v699 = vcvt.s32.f32 %v667
    %v700 = vcvt.s32.f32 %v668
    %v701 = vcvt.s32.f32 %v669
    %v702 = vcvt.s32.f32 %v670
    %v703 = vcvt.s32.f32 %v671
    %v704 = vcvt.s32.f32 %v672
    %v705 = vcvt.s32.f32 %v673
    %v706 = vcvt.s32.f32 %v674
    %v707 = vcvt.s32.f32 %v675
    %v708 = vcvt.s32.f32 %v676
    %v709 = vcvt.s32.f32 %v677
    %v710 = vcvt.s32.f32 %v678
    %v711 = vcvt.s32.f32 %v679
    %v712 = vcvt.s32.f32 %v680
    %v713 = vcvt.s32.f32 %v681
    %v714 = vcvt.s32.f32 %v682
    %v715 = vcvt.s32.f32 %v683
    %v716 = vcvt.s32.f32 %v684
    %v717 = vcvt.s32.f32 %v685
    %v718 = vcvt.s32.f32 %v686
    %v719 = vcvt.s32.f32 %v687
    %v720 = vcvt.s32.f32 %v688
    %v721 = vcvt.s32.f32 %v689
    %v722 = vcvt.s32.f32 %v690
    %v723 = vcvt.s32.f32 %v691
    %v724 = vcvt.s32.f32 %v692
    %v725 = vcvt.s32.f32 %v693
    %v726 = vcvt.s32.f32 %v694
    %v727 = vcvt.s32.f32 %v695
    %v728 = vcvt.s32.f32 %v696
    %v729 = vcvt.s32.f32 %v697
    %v730 = vpack.c.bf16 %v699, %v698
    %v731 = vpack.c.bf16 %v701, %v700
    %v732 = vpack.c.bf16 %v703, %v702
    %v733 = vpack.c.bf16 %v705, %v704
    %v734 = vpack.c.bf16 %v707, %v706
    %v735 = vpack.c.bf16 %v709, %v708
    %v736 = vpack.c.bf16 %v711, %v710
    %v737 = vpack.c.bf16 %v713, %v712
    %v738 = vpack.c.bf16 %v715, %v714
    %v739 = vpack.c.bf16 %v717, %v716
    %v740 = vpack.c.bf16 %v719, %v718
    %v741 = vpack.c.bf16 %v721, %v720
    %v742 = vpack.c.bf16 %v723, %v722
    %v743 = vpack.c.bf16 %v725, %v724
    %v744 = vpack.c.bf16 %v727, %v726
    %v745 = vpack.c.bf16 %v729, %v728
    %v746 = vadd.bf16 %v458, %v730
    %v747 = vadd.bf16 %v459, %v731
    %v748 = vadd.bf16 %v460, %v732
    %v749 = vadd.bf16 %v461, %v733
    %v750 = vadd.bf16 %v462, %v734
    %v751 = vadd.bf16 %v463, %v735
    %v752 = vadd.bf16 %v464, %v736
    %v753 = vadd.bf16 %v465, %v737
    %v754 = vadd.bf16 %v466, %v738
    %v755 = vadd.bf16 %v467, %v739
    %v756 = vadd.bf16 %v468, %v740
    %v757 = vadd.bf16 %v469, %v741
    %v758 = vadd.bf16 %v470, %v742
    %v759 = vadd.bf16 %v471, %v743
    %v760 = vadd.bf16 %v472, %v744
    %v761 = vadd.bf16 %v473, %v745
    %v762 = vld [vmem:[#allocation2] sm:$0xff]
    %v763 = vld [vmem:[#allocation2 + $0x8] sm:$0xff]
    %764 = vmatprep.subr.bf16.mxu0 0
    %765 = vmatpush1.bf16.msra.mxu0 %v753
    %766 = vmatprep.subr.bf16.mxu0 0
    %767 = vmatpush1.bf16.msra.mxu0 %v752
    %768 = vmatprep.subr.bf16.mxu0 0
    %769 = vmatpush1.bf16.msra.mxu0 %v751
    %770 = vmatprep.subr.bf16.mxu0 0
    %771 = vmatpush1.bf16.msra.mxu0 %v750
    %772 = vmatprep.subr.bf16.mxu0 0
    %773 = vmatpush1.bf16.msra.mxu0 %v749
    %774 = vmatprep.subr.bf16.mxu0 0
    %775 = vmatpush1.bf16.msra.mxu0 %v748
    %776 = vmatprep.subr.bf16.mxu0 0
    %777 = vmatpush1.bf16.msra.mxu0 %v747
    %778 = vmatprep.subr.bf16.mxu0 0
    %779 = vmatpush1.bf16.msra.mxu0 %v746
    %780 = vmatprep.subr.bf16.mxu0 0
    %781 = vmatpush2.bf16.msra.mxu0 %v761
    %782 = vmatprep.subr.bf16.mxu0 0
    %783 = vmatpush2.bf16.msra.mxu0 %v760
    %784 = vmatprep.subr.bf16.mxu0 0
    %785 = vmatpush2.bf16.msra.mxu0 %v759
    %786 = vmatprep.subr.bf16.mxu0 0
    %787 = vmatpush2.bf16.msra.mxu0 %v758
    %788 = vmatprep.subr.bf16.mxu0 0
    %789 = vmatpush2.bf16.msra.mxu0 %v757
    %790 = vmatprep.subr.bf16.mxu0 0
    %791 = vmatpush2.bf16.msra.mxu0 %v756
    %792 = vmatprep.subr.bf16.mxu0 0
    %793 = vmatpush2.bf16.msra.mxu0 %v755
    %794 = vmatprep.subr.bf16.mxu0 0
    %795 = vmatpush2.bf16.msra.mxu0 %v754
    %796 = vmatprep.mubr.bf16.mxu0 %v197
    %797 = vmatmul.mubr.bf16.gmra.mxu0 %v196
    %v798 = vpop.f32.mrf.mxu0
    %v799 = vadd.f32 0.0, %v798
    %v800 = vpop.f32.mrf.mxu0
    %v801 = vpop.f32.mrf.mxu0
    %v802 = vadd.f32 0.0, %v801
    %v803 = vpop.f32.mrf.mxu0
    %804 = vdwg.mxu0
    %v805 = vadd.f32 %v762, %v799
    %v806 = vadd.f32 %v763, %v802
    %807 = vst [vmem:[#allocation2] sm:$0xff] %v805
    %808 = vst [vmem:[#allocation2 + $0x8] sm:$0xff] %v806
    // Predicated region
    $region22: #{tpu_custom_call.1} parent=1 // pred_check
      _
    $region23: #{tpu_custom_call.1} parent=1 // pred_check_branch
      %810 = sbr.rel (0) target = $region25
    $region24: #{tpu_custom_call.1} parent=1 // pred_region
      %s812 = ssub.s32 256, 256
      %813 = vsyncadd [#allocation3], %s812
      %s814 = sshll.u32 [#allocation2], 4
      %s815 = int_to_ptr.vmem [resolvable:$true] %s814
      %820 = dma.vmem_to_hbm [thread:$0]  %s815, 256, %s4, [#allocation3], 128, 128, 8
    $region25: #{tpu_custom_call.1} parent=1 // pred_fallthru
      _
    // Predicated region
    $region26: #{tpu_custom_call.1} parent=1 // pred_check
      _
    $region27: #{tpu_custom_call.1} parent=1 // pred_check_branch
      %822 = sbr.rel (0) target = $region29
    $region28: #{tpu_custom_call.1} parent=1 // pred_region
      %823 = dma.done [#allocation3], 256
    $region29: #{tpu_custom_call.1} parent=1 // pred_fallthru
      _
    %824 = vsyncpa [#allocation3], 1

</llo_original>
